<compile_context>
chip_gen: v7x
topology: tpu7x:2x2x1
jax: 0.10.0
libtpu: 0.0.40
codegen_flags: <defaults>
</compile_context>

<pallas_src>
import functools

import jax
import jax.numpy as jnp
from jax.experimental import pallas as pl
from jax.experimental.pallas import tpu as pltpu


def _round_up(n, m):
    return ((n + m - 1) // m) * m


def _mish(v):
    # mish(x) = x * tanh(softplus(x)) = x * t*(t+2) / (t*(t+2) + 2),  t = e^x.
    # Single EUP exp + approx reciprocal (vrcp) instead of exp + log1p + tanh.
    t = jnp.exp(jnp.minimum(v, 20.0))          # clamp avoids overflow; mish(x) ~= x there
    num = t * (t + 2.0)
    r = num * pl.reciprocal(num + 2.0, approx=True)
    return jnp.where(v > 20.0, v, v * r)


def _brain_kernel(widths, out_size, x_ref, *rest):
    """Fused MLP forward for one folded-batch tile.

    rest = (w_hidden_0, ..., w_hidden_{n-1}, w_head, b_all, out_ref)
      w_*   : (in*, out*) bf16 block-diagonal VMEM-resident weights
      b_all : (n_layers, max_width) f32 zero-padded fused biases
      out_ref: (tile_rows, R*2*out_size) f32; within each 2*out_size lane group
               the first out_size lanes are the tanh ("mean") head, the last
               out_size lanes the relu ("dev") head.
    """
    out_ref = rest[-1]
    b_ref = rest[-2]
    w_refs = rest[:-2]
    n_hidden = len(w_refs) - 1

    h = x_ref[...]                                       # f32 activations
    for k in range(n_hidden):
        n = widths[k]
        z = jnp.dot(h.astype(jnp.bfloat16), w_refs[k][...],
                    preferred_element_type=jnp.float32)
        # (1, n) bias lane-broadcasts in the add; static slice, no copy.
        h = _mish(z + b_ref[k:k + 1, :n])

    # Fused mean/dev head: one matmul producing all head lanes at once.
    hw = widths[n_hidden]                                # = R * 2 * out_size
    z = jnp.dot(h.astype(jnp.bfloat16), w_refs[n_hidden][...],
                preferred_element_type=jnp.float32)
    z = z + b_ref[n_hidden:n_hidden + 1, :hw]

    # Single lane-dense store: iota lane mask picks tanh (mean) vs relu (dev).
    lane = jax.lax.broadcasted_iota(jnp.int32, z.shape, 1)
    is_mean = (lane % (2 * out_size)) < out_size
    out_ref[...] = jnp.where(is_mean, jnp.tanh(z), jnp.maximum(z, 0.0))


def pack_params(params, replicate=None):
    """One-time conversion from torch-layout params (W=(out,in), b=(out,)) to
    kernel-ready packed params.  Do this OUTSIDE the hot path."""
    hidden_ws = [jnp.asarray(w, jnp.float32).T for (w, _) in params["hidden"]]   # (in, out)
    hidden_bs = [jnp.asarray(b, jnp.float32) for (_, b) in params["hidden"]]

    wm, bm = params["mean"]
    wd, bd = params["dev"]
    head_w = jnp.concatenate([jnp.asarray(wm, jnp.float32).T,
                              jnp.asarray(wd, jnp.float32).T], axis=1)           # (hid, 2*out)
    head_b = jnp.concatenate([jnp.asarray(bm, jnp.float32),
                              jnp.asarray(bd, jnp.float32)])                     # (2*out,)

    ws = hidden_ws + [head_w]
    bs = hidden_bs + [head_b]
    in_size = int(ws[0].shape[0])
    out_size = int(jnp.asarray(wm).shape[0])

    # Block-diagonal replication factor: fold R batch rows into lanes so narrow
    # layer widths fill the 128-lane vregs / MXU.
    if replicate is None:
        max_dim = max([in_size] + [int(w.shape[1]) for w in ws])
        replicate = max(1, 128 // max_dim)
    R = int(replicate)
    eye = jnp.eye(R, dtype=jnp.float32)
    ws = [jnp.kron(eye, w) for w in ws]                  # (R*in, R*out) block-diag
    bs = [jnp.tile(b, R) for b in bs]                    # (R*out,)

    widths = tuple(int(w.shape[1]) for w in ws)
    max_w = max(widths)
    b_all = jnp.stack([jnp.pad(b, (0, max_w - b.shape[0])) for b in bs]
                      ).astype(jnp.float32)              # (n_layers, max_w)
    weights = tuple(w.astype(jnp.bfloat16) for w in ws)  # bf16 MXU operands

    return {
        "weights": weights,
        "bias": b_all,
        "widths": widths,
        "out_size": out_size,
        "in_size": in_size,
        "replicate": R,
    }


def brain_forward(x, packed, *, tile_rows=None):
    """x: (batch, input_size) f32. Returns (2*batch, out_size): rows [0:batch)
    are the tanh ("mean") head, rows [batch:2*batch) the relu ("dev") head
    (== torch.cat([x_mean, x_dev], 0))."""
    batch, in_size = x.shape
    R = packed["replicate"]
    weights = packed["weights"]
    b_all = packed["bias"]
    widths = packed["widths"]
    out_size = packed["out_size"]
    assert in_size == packed["in_size"], (in_size, packed["in_size"])
    head_w = widths[-1]                                  # R * 2 * out_size

    # --- tile selection ---------------------------------------------------
    # Large folded-row tiles amortise the ~0.35 us per-grid-step overhead; the
    # 1024-row cap (4096 batch rows at R=4, < ~2 MiB of double-buffered x/out
    # blocks) stays far below v7x's 64 MiB VMEM.  Use >= 2 grid steps whenever
    # there is enough work so both v7x TensorCores get a share.
    n_fold = pl.cdiv(batch, R)                           # folded rows actually needed
    if tile_rows is None:
        if n_fold >= 16:
            tile_rows = min(1024, _round_up(pl.cdiv(n_fold, 2), 8))
        else:
            tile_rows = 8
    tile_rows = max(8, _round_up(int(tile_rows), 8))
    steps = pl.cdiv(n_fold, tile_rows)
    n_fold_pad = steps * tile_rows
    batch_pad = n_fold_pad * R

    # --- fold batch rows into lanes (free row-major reshape; zero-pad tail) --
    xp = x.astype(jnp.float32)
    if batch_pad != batch:
        xp = jnp.pad(xp, ((0, batch_pad - batch), (0, 0)))
    x_fold = xp.reshape(n_fold_pad, R * in_size)

    kernel = functools.partial(_brain_kernel, widths, out_size)

    in_specs = [pl.BlockSpec((tile_rows, R * in_size), lambda i: (i, 0))]    # streamed x
    in_specs += [pl.BlockSpec(w.shape, lambda i: (0, 0)) for w in weights]   # resident W
    in_specs += [pl.BlockSpec(b_all.shape, lambda i: (0, 0))]                # resident b

    out = pl.pallas_call(
        kernel,
        out_shape=jax.ShapeDtypeStruct((n_fold_pad, head_w), jnp.float32),
        grid=(steps,),
        in_specs=in_specs,
        out_specs=pl.BlockSpec((tile_rows, head_w), lambda i: (i, 0)),
        compiler_params=pltpu.CompilerParams(
            dimension_semantics=("parallel",),           # megacore sharding (v7x: 2 TCs)
            vmem_limit_bytes=48 * 1024 * 1024,           # headroom for large user tiles;
                                                         # still below v7x's 64 MiB VMEM
        ),
    )(x_fold, *weights, b_all)

    # (n_fold, R*2*out) -> (2, batch, out) -> (2*batch, out).  One cheap
    # relayout in XLA (outside the grid), then drop padded rows.
    out = out.reshape(n_fold_pad, R, 2, out_size)
    out = jnp.transpose(out, (2, 0, 1, 3)).reshape(2, batch_pad, out_size)
    return out[:, :batch, :].reshape(2 * batch, out_size)


def brain_ref(x, params):
    """Pure-JAX reference mirroring the PyTorch forward (torch-layout params)."""
    def mish(v):
        return v * jnp.tanh(jax.nn.softplus(v))

    h = x
    for w, b in params["hidden"]:
        h = mish(h @ w.T + b)
    wm, bm = params["mean"]
    wd, bd = params["dev"]
    x_mean = jnp.tanh(h @ wm.T + bm)
    x_dev = jax.nn.relu(h @ wd.T + bd)
    return jnp.concatenate([x_mean, x_dev], axis=0)


def init_params(key, input_size, output_size, hidden_sizes):
    """Deterministic synthetic init (torch nn.Linear shapes: W=(out,in), b=(out,))."""
    params = {"hidden": []}
    sizes = [input_size] + list(hidden_sizes)
    for i in range(len(hidden_sizes)):
        key, kw, kb = jax.random.split(key, 3)
        w = 0.1 * jax.random.normal(kw, (sizes[i + 1], sizes[i]), jnp.float32)
        b = 0.1 * jax.random.normal(kb, (sizes[i + 1],), jnp.float32)
        params["hidden"].append((w, b))
    for name in ("mean", "dev"):
        key, kw, kb = jax.random.split(key, 3)
        w = 0.1 * jax.random.normal(kw, (output_size, hidden_sizes[-1]), jnp.float32)
        b = 0.1 * jax.random.normal(kb, (output_size,), jnp.float32)
        params[name] = (w, b)
    return params


if __name__ == "__main__":
    key = jax.random.PRNGKey(0)
    batch, input_size, output_size = 8, 16, 8
    hidden_sizes = (32, 32, 32)   # input_fc + 2 hidden Linear+Mish layers

    key, kx = jax.random.split(key)
    x = jax.random.normal(kx, (batch, input_size), jnp.float32)
    params = init_params(key, input_size, output_size, hidden_sizes)

    packed = pack_params(params)            # one-time: transpose/fuse/block-diag/bf16
    out = jax.block_until_ready(brain_forward(x, packed))

    ref = brain_ref(x, params)
    assert out.shape == (2 * batch, output_size), out.shape
    # bf16 MXU operands + approx reciprocal in mish => loosened tolerance vs f32 ref.
    err = float(jnp.max(jnp.abs(out - ref)))
    assert jnp.allclose(out, ref, atol=2e-2, rtol=2e-2), f"max abs err {err}"

    print("KERNEL_OK")
</pallas_src>

<mosaic_0001>
module attributes {stable_mosaic.version = 11 : i64} {
  func.func @_brain_kernel(%arg0: i32, %arg1: memref<8x64xf32, #tpu.memory_space<vmem>>, %arg2: memref<64x128xbf16, #tpu.memory_space<vmem>>, %arg3: memref<128x128xbf16, #tpu.memory_space<vmem>>, %arg4: memref<128x128xbf16, #tpu.memory_space<vmem>>, %arg5: memref<128x64xbf16, #tpu.memory_space<vmem>>, %arg6: memref<4x128xf32, #tpu.memory_space<vmem>>, %arg7: memref<8x64xf32, #tpu.memory_space<vmem>>) attributes {dimension_semantics = [#tpu.dimension_semantics<parallel>], iteration_bounds = array<i64: 1>, scalar_prefetch = 0 : i64, scratch_operands = 0 : i64, tpu.core_type = #tpu.core_type<tc>, window_params = [{transform_indices = @transform_0, window_bounds = array<i64: 8, 64>}, {pipeline_mode = #tpu.pipeline_mode<synchronous>, transform_indices = @transform_1, window_bounds = array<i64: 64, 128>}, {pipeline_mode = #tpu.pipeline_mode<synchronous>, transform_indices = @transform_2, window_bounds = array<i64: 128, 128>}, {pipeline_mode = #tpu.pipeline_mode<synchronous>, transform_indices = @transform_3, window_bounds = array<i64: 128, 128>}, {pipeline_mode = #tpu.pipeline_mode<synchronous>, transform_indices = @transform_4, window_bounds = array<i64: 128, 64>}, {pipeline_mode = #tpu.pipeline_mode<synchronous>, transform_indices = @transform_5, window_bounds = array<i64: 4, 128>}, {transform_indices = @transform_6, window_bounds = array<i64: 8, 64>}]} {
    %c0 = arith.constant 0 : index
    %c0_0 = arith.constant 0 : index
    %0 = vector.load %arg1[%c0, %c0_0] : memref<8x64xf32, #tpu.memory_space<vmem>>, vector<8x64xf32>
    %1 = arith.truncf %0 : vector<8x64xf32> to vector<8x64xbf16>
    %c0_1 = arith.constant 0 : index
    %c0_2 = arith.constant 0 : index
    %2 = vector.load %arg2[%c0_1, %c0_2] : memref<64x128xbf16, #tpu.memory_space<vmem>>, vector<64x128xbf16>
    %cst = arith.constant dense<0.000000e+00> : vector<8x128xf32>
    %3 = tpu.matmul %1, %2, %cst {dimension_numbers = #tpu.dot_dimension_numbers<[1], [0], [0], [1], [0, 0, 1, 1], [], []>} : vector<8x64xbf16>, vector<64x128xbf16>, vector<8x128xf32> -> vector<8x128xf32>
    %c0_3 = arith.constant 0 : index
    %c0_4 = arith.constant 0 : index
    %4 = vector.load %arg6[%c0_3, %c0_4] : memref<4x128xf32, #tpu.memory_space<vmem>>, vector<1x128xf32>
    %5 = vector.broadcast %4 : vector<1x128xf32> to vector<8x128xf32>
    %6 = arith.addf %3, %5 : vector<8x128xf32>
    %cst_5 = arith.constant 2.000000e+01 : f32
    %7 = vector.broadcast %cst_5 : f32 to vector<8x128xf32>
    %8 = arith.minimumf %6, %7 : vector<8x128xf32>
    %9 = math.exp %8 : vector<8x128xf32>
    %cst_6 = arith.constant 2.000000e+00 : f32
    %10 = vector.broadcast %cst_6 : f32 to vector<8x128xf32>
    %11 = arith.addf %9, %10 : vector<8x128xf32>
    %12 = arith.mulf %9, %11 : vector<8x128xf32>
    %cst_7 = arith.constant 2.000000e+00 : f32
    %13 = vector.broadcast %cst_7 : f32 to vector<8x128xf32>
    %14 = arith.addf %12, %13 : vector<8x128xf32>
    %15 = tpu.reciprocal %14 {approx = true} : vector<8x128xf32> -> vector<8x128xf32>
    %16 = arith.mulf %12, %15 : vector<8x128xf32>
    %cst_8 = arith.constant 2.000000e+01 : f32
    %17 = vector.broadcast %cst_8 : f32 to vector<8x128xf32>
    %18 = arith.cmpf ogt, %6, %17 : vector<8x128xf32>
    %19 = arith.mulf %6, %16 : vector<8x128xf32>
    %20 = arith.select %18, %6, %19 : vector<8x128xi1>, vector<8x128xf32>
    %21 = arith.truncf %20 : vector<8x128xf32> to vector<8x128xbf16>
    %c0_9 = arith.constant 0 : index
    %c0_10 = arith.constant 0 : index
    %22 = vector.load %arg3[%c0_9, %c0_10] : memref<128x128xbf16, #tpu.memory_space<vmem>>, vector<128x128xbf16>
    %cst_11 = arith.constant dense<0.000000e+00> : vector<8x128xf32>
    %23 = tpu.matmul %21, %22, %cst_11 {dimension_numbers = #tpu.dot_dimension_numbers<[1], [0], [0], [1], [0, 0, 1, 1], [], []>} : vector<8x128xbf16>, vector<128x128xbf16>, vector<8x128xf32> -> vector<8x128xf32>
    %c1 = arith.constant 1 : index
    %c0_12 = arith.constant 0 : index
    %24 = vector.load %arg6[%c1, %c0_12] : memref<4x128xf32, #tpu.memory_space<vmem>>, vector<1x128xf32>
    %25 = vector.broadcast %24 : vector<1x128xf32> to vector<8x128xf32>
    %26 = arith.addf %23, %25 : vector<8x128xf32>
    %cst_13 = arith.constant 2.000000e+01 : f32
    %27 = vector.broadcast %cst_13 : f32 to vector<8x128xf32>
    %28 = arith.minimumf %26, %27 : vector<8x128xf32>
    %29 = math.exp %28 : vector<8x128xf32>
    %cst_14 = arith.constant 2.000000e+00 : f32
    %30 = vector.broadcast %cst_14 : f32 to vector<8x128xf32>
    %31 = arith.addf %29, %30 : vector<8x128xf32>
    %32 = arith.mulf %29, %31 : vector<8x128xf32>
    %cst_15 = arith.constant 2.000000e+00 : f32
    %33 = vector.broadcast %cst_15 : f32 to vector<8x128xf32>
    %34 = arith.addf %32, %33 : vector<8x128xf32>
    %35 = tpu.reciprocal %34 {approx = true} : vector<8x128xf32> -> vector<8x128xf32>
    %36 = arith.mulf %32, %35 : vector<8x128xf32>
    %cst_16 = arith.constant 2.000000e+01 : f32
    %37 = vector.broadcast %cst_16 : f32 to vector<8x128xf32>
    %38 = arith.cmpf ogt, %26, %37 : vector<8x128xf32>
    %39 = arith.mulf %26, %36 : vector<8x128xf32>
    %40 = arith.select %38, %26, %39 : vector<8x128xi1>, vector<8x128xf32>
    %41 = arith.truncf %40 : vector<8x128xf32> to vector<8x128xbf16>
    %c0_17 = arith.constant 0 : index
    %c0_18 = arith.constant 0 : index
    %42 = vector.load %arg4[%c0_17, %c0_18] : memref<128x128xbf16, #tpu.memory_space<vmem>>, vector<128x128xbf16>
    %cst_19 = arith.constant dense<0.000000e+00> : vector<8x128xf32>
    %43 = tpu.matmul %41, %42, %cst_19 {dimension_numbers = #tpu.dot_dimension_numbers<[1], [0], [0], [1], [0, 0, 1, 1], [], []>} : vector<8x128xbf16>, vector<128x128xbf16>, vector<8x128xf32> -> vector<8x128xf32>
    %c2 = arith.constant 2 : index
    %c0_20 = arith.constant 0 : index
    %44 = vector.load %arg6[%c2, %c0_20] : memref<4x128xf32, #tpu.memory_space<vmem>>, vector<1x128xf32>
    %45 = vector.broadcast %44 : vector<1x128xf32> to vector<8x128xf32>
    %46 = arith.addf %43, %45 : vector<8x128xf32>
    %cst_21 = arith.constant 2.000000e+01 : f32
    %47 = vector.broadcast %cst_21 : f32 to vector<8x128xf32>
    %48 = arith.minimumf %46, %47 : vector<8x128xf32>
    %49 = math.exp %48 : vector<8x128xf32>
    %cst_22 = arith.constant 2.000000e+00 : f32
    %50 = vector.broadcast %cst_22 : f32 to vector<8x128xf32>
    %51 = arith.addf %49, %50 : vector<8x128xf32>
    %52 = arith.mulf %49, %51 : vector<8x128xf32>
    %cst_23 = arith.constant 2.000000e+00 : f32
    %53 = vector.broadcast %cst_23 : f32 to vector<8x128xf32>
    %54 = arith.addf %52, %53 : vector<8x128xf32>
    %55 = tpu.reciprocal %54 {approx = true} : vector<8x128xf32> -> vector<8x128xf32>
    %56 = arith.mulf %52, %55 : vector<8x128xf32>
    %cst_24 = arith.constant 2.000000e+01 : f32
    %57 = vector.broadcast %cst_24 : f32 to vector<8x128xf32>
    %58 = arith.cmpf ogt, %46, %57 : vector<8x128xf32>
    %59 = arith.mulf %46, %56 : vector<8x128xf32>
    %60 = arith.select %58, %46, %59 : vector<8x128xi1>, vector<8x128xf32>
    %61 = arith.truncf %60 : vector<8x128xf32> to vector<8x128xbf16>
    %c0_25 = arith.constant 0 : index
    %c0_26 = arith.constant 0 : index
    %62 = vector.load %arg5[%c0_25, %c0_26] : memref<128x64xbf16, #tpu.memory_space<vmem>>, vector<128x64xbf16>
    %cst_27 = arith.constant dense<0.000000e+00> : vector<8x64xf32>
    %63 = tpu.matmul %61, %62, %cst_27 {dimension_numbers = #tpu.dot_dimension_numbers<[1], [0], [0], [1], [0, 0, 1, 1], [], []>} : vector<8x128xbf16>, vector<128x64xbf16>, vector<8x64xf32> -> vector<8x64xf32>
    %c3 = arith.constant 3 : index
    %c0_28 = arith.constant 0 : index
    %64 = vector.load %arg6[%c3, %c0_28] : memref<4x128xf32, #tpu.memory_space<vmem>>, vector<1x64xf32>
    %65 = vector.broadcast %64 : vector<1x64xf32> to vector<8x64xf32>
    %66 = arith.addf %63, %65 : vector<8x64xf32>
    %67 = tpu.iota {dimensions = array<i32: 1>} : vector<8x64xi32>
    %c16_i32 = arith.constant 16 : i32
    %c0_i32 = arith.constant 0 : i32
    %68 = arith.cmpi eq, %c16_i32, %c0_i32 : i32
    %c1_i32 = arith.constant 1 : i32
    %69 = arith.select %68, %c1_i32, %c16_i32 : i32
    %70 = vector.broadcast %69 : i32 to vector<8x64xi32>
    %71 = arith.remsi %67, %70 : vector<8x64xi32>
    %c0_i32_29 = arith.constant 0 : i32
    %72 = vector.broadcast %c0_i32_29 : i32 to vector<8x64xi32>
    %73 = arith.cmpi ne, %71, %72 : vector<8x64xi32>
    %c0_i32_30 = arith.constant 0 : i32
    %74 = vector.broadcast %c0_i32_30 : i32 to vector<8x64xi32>
    %75 = arith.cmpi slt, %71, %74 : vector<8x64xi32>
    %c0_i32_31 = arith.constant 0 : i32
    %76 = arith.cmpi slt, %69, %c0_i32_31 : i32
    %77 = vector.broadcast %76 : i1 to vector<8x64xi1>
    %78 = vector.broadcast %77 : vector<8x64xi1> to vector<8x64xi1>
    %79 = arith.xori %75, %78 : vector<8x64xi1>
    %80 = arith.andi %79, %73 : vector<8x64xi1>
    %81 = vector.broadcast %69 : i32 to vector<8x64xi32>
    %82 = arith.addi %71, %81 : vector<8x64xi32>
    %83 = arith.select %80, %82, %71 : vector<8x64xi1>, vector<8x64xi32>
    %c8_i32 = arith.constant 8 : i32
    %84 = vector.broadcast %c8_i32 : i32 to vector<8x64xi32>
    %85 = arith.cmpi slt, %83, %84 : vector<8x64xi32>
    %86 = math.tanh %66 : vector<8x64xf32>
    %cst_32 = arith.constant 0.000000e+00 : f32
    %87 = vector.broadcast %cst_32 : f32 to vector<8x64xf32>
    %88 = arith.maximumf %66, %87 : vector<8x64xf32>
    %89 = arith.select %85, %86, %88 : vector<8x64xi1>, vector<8x64xf32>
    %c0_33 = arith.constant 0 : index
    %c0_34 = arith.constant 0 : index
    %90 = vector.load %arg7[%c0_33, %c0_34] : memref<8x64xf32, #tpu.memory_space<vmem>>, vector<8x64xf32>
    tpu.vector_store %arg7[%c0_33, %c0_34], %89 {strides = array<i32>} : memref<8x64xf32, #tpu.memory_space<vmem>>, vector<8x64xf32>,
    return
  }
  func.func @transform_0(%arg0: i32) -> (i32, i32) {
    %c0_i32 = arith.constant 0 : i32
    %c0_i32_0 = arith.constant 0 : i32
    return %arg0, %c0_i32 : i32, i32
  }
  func.func @transform_1(%arg0: i32) -> (i32, i32) {
    %c0_i32 = arith.constant 0 : i32
    %c0_i32_0 = arith.constant 0 : i32
    %c0_i32_1 = arith.constant 0 : i32
    return %c0_i32, %c0_i32_0 : i32, i32
  }
  func.func @transform_2(%arg0: i32) -> (i32, i32) {
    %c0_i32 = arith.constant 0 : i32
    %c0_i32_0 = arith.constant 0 : i32
    %c0_i32_1 = arith.constant 0 : i32
    return %c0_i32, %c0_i32_0 : i32, i32
  }
  func.func @transform_3(%arg0: i32) -> (i32, i32) {
    %c0_i32 = arith.constant 0 : i32
    %c0_i32_0 = arith.constant 0 : i32
    %c0_i32_1 = arith.constant 0 : i32
    return %c0_i32, %c0_i32_0 : i32, i32
  }
  func.func @transform_4(%arg0: i32) -> (i32, i32) {
    %c0_i32 = arith.constant 0 : i32
    %c0_i32_0 = arith.constant 0 : i32
    %c0_i32_1 = arith.constant 0 : i32
    return %c0_i32, %c0_i32_0 : i32, i32
  }
  func.func @transform_5(%arg0: i32) -> (i32, i32) {
    %c0_i32 = arith.constant 0 : i32
    %c0_i32_0 = arith.constant 0 : i32
    %c0_i32_1 = arith.constant 0 : i32
    return %c0_i32, %c0_i32_0 : i32, i32
  }
  func.func @transform_6(%arg0: i32) -> (i32, i32) {
    %c0_i32 = arith.constant 0 : i32
    %c0_i32_0 = arith.constant 0 : i32
    return %arg0, %c0_i32 : i32, i32
  }
}

</mosaic_0001>

<llo_original>
// kernel: tpu_custom_call.1
$region0: #{tpu_custom_call.1}
  #allocation0 [shape = 'u32[]', space=smem, size = 0x4, offset = 0x4, fixed_abs, tag = 'smem constant byte address 0x4 - core index']
  #allocation1 [shape = 'u32[144,128]{1,0:T(1,128)}', space=vmem, size = 0x12000, scoped, tag = 'internal scratch']
  %s0 = inlined_call_operand.hbm [shape: f32[8,64], index: 0, kind: input, shape index: {}]
  %s1 = inlined_call_operand.vmem [shape: bf16[64,128], index: 1, kind: input, shape index: {}]
  %s2 = inlined_call_operand.vmem [shape: bf16[128,128], index: 2, kind: input, shape index: {}]
  %s3 = inlined_call_operand.hbm [shape: bf16[128,128], index: 3, kind: input, shape index: {}]
  %s4 = inlined_call_operand.vmem [shape: bf16[128,64], index: 4, kind: input, shape index: {}]
  %s5 = inlined_call_operand.vmem [shape: f32[4,128], index: 5, kind: input, shape index: {}]
  %s6 = inlined_call_operand.hbm [shape: f32[8,64], index: 6, kind: output, shape index: {}]
  %s7 = sld [smem:[#allocation0]]
  $region42: #{tpu_custom_call.1} parent=0
    _
  %s9 = ssub.s32 1, %s7
  %s10 = scalar_select 0, %s9, %s7
  $region1: #{tpu_custom_call.1} parent=0
    #allocation2 [shape = 'u8[4096]{0}', space=vmem, size = 0x1000, scoped, tag = 'input window, operand 0, single buffered']
    #allocation3 [shape = 's32[1]{0}', space=sflag, size = 0x4, scoped, tag = 'scoped memory for tpu_custom_call.1']
    #allocation4 [shape = 's32[1]{0}', space=sflag, size = 0x4, scoped, tag = 'scoped memory for tpu_custom_call.1']
    #allocation5 [shape = 'u8[32768]{0}', space=vmem, size = 0x8000, scoped, tag = 'input window, operand 3, single buffered']
    #allocation6 [shape = 's32[1]{0}', space=sflag, size = 0x4, scoped, tag = 'scoped memory for tpu_custom_call.1']
    #allocation7 [shape = 'u8[4096]{0}', space=vmem, size = 0x1000, scoped, tag = 'output window, operand 0, single buffered']
    %11 = vsyncpa [#allocation3], 0
    %12 = vsyncpa [#allocation6], 0
    %13 = vsyncpa [#allocation4], 0
    // Predicated region
    $region2: #{tpu_custom_call.1} parent=1 // pred_check
      _
    $region3: #{tpu_custom_call.1} parent=1 // pred_check_branch
      %15 = sbr.rel (0) target = $region5
    $region4: #{tpu_custom_call.1} parent=1 // pred_region
      %s17 = ssub.s32 128, 128
      %18 = vsyncadd [#allocation3], %s17
      %s20 = sshll.u32 [#allocation2], 4
      %s21 = int_to_ptr.vmem [resolvable:$true] %s20
      %23 = dma.hbm_to_vmem [thread:$0]  %s0, 128, %s21, [#allocation3]
    $region5: #{tpu_custom_call.1} parent=1 // pred_fallthru
      _
    // Predicated region
    $region6: #{tpu_custom_call.1} parent=1 // pred_check
      _
    $region7: #{tpu_custom_call.1} parent=1 // pred_check_branch
      %25 = sbr.rel (0) target = $region9
    $region8: #{tpu_custom_call.1} parent=1 // pred_region
      _
    $region9: #{tpu_custom_call.1} parent=1 // pred_fallthru
      _
    // Predicated region
    $region10: #{tpu_custom_call.1} parent=1 // pred_check
      _
    $region11: #{tpu_custom_call.1} parent=1 // pred_check_branch
      %27 = sbr.rel (0) target = $region13
    $region12: #{tpu_custom_call.1} parent=1 // pred_region
      _
    $region13: #{tpu_custom_call.1} parent=1 // pred_fallthru
      _
    // Predicated region
    $region14: #{tpu_custom_call.1} parent=1 // pred_check
      _
    $region15: #{tpu_custom_call.1} parent=1 // pred_check_branch
      %29 = sbr.rel (0) target = $region17
    $region16: #{tpu_custom_call.1} parent=1 // pred_region
      %s31 = ssub.s32 1024, 1024
      %32 = vsyncadd [#allocation6], %s31
      %s33 = sshll.u32 [#allocation5], 4
      %s34 = int_to_ptr.vmem [resolvable:$true] %s33
      %39 = dma.hbm_to_vmem [thread:$0]  %s3, 1024, %s34, [#allocation6], 64, 64, 4
    $region17: #{tpu_custom_call.1} parent=1 // pred_fallthru
      _
    // Predicated region
    $region18: #{tpu_custom_call.1} parent=1 // pred_check
      _
    $region19: #{tpu_custom_call.1} parent=1 // pred_check_branch
      %41 = sbr.rel (0) target = $region21
    $region20: #{tpu_custom_call.1} parent=1 // pred_region
      _
    $region21: #{tpu_custom_call.1} parent=1 // pred_fallthru
      _
    // Predicated region
    $region22: #{tpu_custom_call.1} parent=1 // pred_check
      _
    $region23: #{tpu_custom_call.1} parent=1 // pred_check_branch
      %43 = sbr.rel (0) target = $region25
    $region24: #{tpu_custom_call.1} parent=1 // pred_region
      _
    $region25: #{tpu_custom_call.1} parent=1 // pred_fallthru
      _
    // Predicated region
    $region26: #{tpu_custom_call.1} parent=1 // pred_check
      _
    $region27: #{tpu_custom_call.1} parent=1 // pred_check_branch
      %45 = sbr.rel (0) target = $region29
    $region28: #{tpu_custom_call.1} parent=1 // pred_region
      %46 = dma.done [#allocation3], 128
    $region29: #{tpu_custom_call.1} parent=1 // pred_fallthru
      _
    // Predicated region
    $region30: #{tpu_custom_call.1} parent=1 // pred_check
      _
    $region31: #{tpu_custom_call.1} parent=1 // pred_check_branch
      %48 = sbr.rel (0) target = $region33
    $region32: #{tpu_custom_call.1} parent=1 // pred_region
      %49 = dma.done [#allocation6], 1024
    $region33: #{tpu_custom_call.1} parent=1 // pred_fallthru
      _
    %v51 = vld [vmem:[#allocation2] sm:$0xff]
    %v52 = vpack.c.bf16 %v51, %v51
    %v53 = vld [vmem:[%s1] sm:$0xf]
    %v54 = vld [vmem:[%s1 + $0x4] sm:$0xf]
    %v55 = vld [vmem:[%s1 + $0x8] sm:$0xf]
    %v56 = vld [vmem:[%s1 + $0xc] sm:$0xf]
    %v57 = vld [vmem:[%s1 + $0x10] sm:$0xf]
    %v58 = vld [vmem:[%s1 + $0x14] sm:$0xf]
    %v59 = vld [vmem:[%s1 + $0x18] sm:$0xf]
    %v60 = vld [vmem:[%s1 + $0x1c] sm:$0xf]
    %v61 = vld [vmem:[%s5] sm:$0x1]
    %v62 = vlaneseq
    %v63 = vshrl.u32 %v62, 7
    %v64 = vsub.s32 0, %v63
    %v65 = vrot.slane %v61, %v64
    %v74 = vunpack.c.l.b16 %v53
    %v75 = vunpack.c.l.b16 %v54
    %v76 = vunpack.c.l.b16 %v55
    %v77 = vunpack.c.l.b16 %v56
    %v78 = vunpack.c.l.b16 %v57
    %v79 = vunpack.c.l.b16 %v58
    %v80 = vunpack.c.l.b16 %v59
    %v81 = vunpack.c.l.b16 %v60
    %v82 = vpack.c.b16 %v75, %v74
    %v83 = vpack.c.b16 %v77, %v76
    %v84 = vpack.c.b16 %v79, %v78
    %v85 = vpack.c.b16 %v81, %v80
    %vm90 = vcmask 523264
    %v92 = vsel %vm90, %v52, 0
    %94 = vmatprep.subr.bf16.mxu0 0
    %95 = vmatpush1.bf16.msra.mxu0 %v82
    %96 = vmatprep.subr.bf16.mxu0 0
    %97 = vmatpush1.bf16.msra.mxu0 %v83
    %98 = vmatprep.subr.bf16.mxu0 0
    %99 = vmatpush1.bf16.msra.mxu0 %v84
    %100 = vmatprep.subr.bf16.mxu0 0
    %101 = vmatpush1.bf16.msra.mxu0 %v85
    %102 = vmatprep.subr.bf16.mxu0 0
    %103 = vmatpush1.bf16.msra.mxu0 0
    %104 = vmatprep.subr.bf16.mxu0 0
    %105 = vmatpush1.bf16.msra.mxu0 0
    %106 = vmatprep.subr.bf16.mxu0 0
    %107 = vmatpush1.bf16.msra.mxu0 0
    %108 = vmatprep.subr.bf16.mxu0 0
    %109 = vmatpush1.bf16.msra.mxu0 0
    %110 = vmatprep.subr.bf16.mxu0 0
    %111 = vmatpush1.bf16.msra.mxu0 0
    %112 = vmatprep.subr.bf16.mxu0 0
    %113 = vmatpush1.bf16.msra.mxu0 0
    %114 = vmatprep.subr.bf16.mxu0 0
    %115 = vmatpush1.bf16.msra.mxu0 0
    %116 = vmatprep.subr.bf16.mxu0 0
    %117 = vmatpush1.bf16.msra.mxu0 0
    %118 = vmatprep.subr.bf16.mxu0 0
    %119 = vmatpush1.bf16.msra.mxu0 0
    %120 = vmatprep.subr.bf16.mxu0 0
    %121 = vmatpush1.bf16.msra.mxu0 0
    %122 = vmatprep.subr.bf16.mxu0 0
    %123 = vmatpush1.bf16.msra.mxu0 0
    %124 = vmatprep.subr.bf16.mxu0 0
    %125 = vmatpush1.bf16.msra.mxu0 0
    %126 = vmatprep.mubr.bf16.mxu0 0
    %127 = vmatmul.mubr.bf16.gmra.mrb[0].mxu0 %v92
    %v128 = vpop.f32.mrb[0].mxu0
    %v129 = vadd.f32 %v65, %v128
    %v130 = vpop.f32.mrb[0].mxu0
    %v131 = vpop.f32.mrb[0].mxu0
    %v132 = vpop.f32.mrb[0].mxu0
    %133 = vdwg.mxu0
    %v134 = vmin.f32 %v129, 20.0
    %v135 = vmul.f32 %v134, 1.442695
    %v136 = vpow.pop %v135
    %v137 = vadd.f32 %v136, 2.0
    %v138 = vmul.f32 %v136, %v137
    %v139 = vadd.f32 %v138, 2.0
    %v140 = vrcp.pop %v139
    %v141 = vmul.f32 %v138, %v140
    %vm142 = vcmp.gt.f32.partialorder %v129, 20.0
    %v143 = vmul.f32 %v129, %v141
    %v144 = vsel %vm142, %v129, %v143
    %v145 = vpack.c.bf16 %v144, %v144
    %v146 = vld [vmem:[%s2] sm:$0xf]
    %v147 = vld [vmem:[%s2 + $0x4] sm:$0xf]
    %v148 = vld [vmem:[%s2 + $0x8] sm:$0xf]
    %v149 = vld [vmem:[%s2 + $0xc] sm:$0xf]
    %v150 = vld [vmem:[%s2 + $0x10] sm:$0xf]
    %v151 = vld [vmem:[%s2 + $0x14] sm:$0xf]
    %v152 = vld [vmem:[%s2 + $0x18] sm:$0xf]
    %v153 = vld [vmem:[%s2 + $0x1c] sm:$0xf]
    %v154 = vld [vmem:[%s2 + $0x20] sm:$0xf]
    %v155 = vld [vmem:[%s2 + $0x24] sm:$0xf]
    %v156 = vld [vmem:[%s2 + $0x28] sm:$0xf]
    %v157 = vld [vmem:[%s2 + $0x2c] sm:$0xf]
    %v158 = vld [vmem:[%s2 + $0x30] sm:$0xf]
    %v159 = vld [vmem:[%s2 + $0x34] sm:$0xf]
    %v160 = vld [vmem:[%s2 + $0x38] sm:$0xf]
    %v161 = vld [vmem:[%s2 + $0x3c] sm:$0xf]
    %v162 = vld [vmem:[%s5 + $0x1] sm:$0x1]
    %v163 = vlaneseq
    %v164 = vshrl.u32 %v163, 7
    %v165 = vsub.s32 0, %v164
    %v166 = vrot.slane %v162, %v165
    %v183 = vunpack.c.l.b16 %v146
    %v184 = vunpack.c.l.b16 %v147
    %v185 = vunpack.c.l.b16 %v148
    %v186 = vunpack.c.l.b16 %v149
    %v187 = vunpack.c.l.b16 %v150
    %v188 = vunpack.c.l.b16 %v151
    %v189 = vunpack.c.l.b16 %v152
    %v190 = vunpack.c.l.b16 %v153
    %v191 = vunpack.c.l.b16 %v154
    %v192 = vunpack.c.l.b16 %v155
    %v193 = vunpack.c.l.b16 %v156
    %v194 = vunpack.c.l.b16 %v157
    %v195 = vunpack.c.l.b16 %v158
    %v196 = vunpack.c.l.b16 %v159
    %v197 = vunpack.c.l.b16 %v160
    %v198 = vunpack.c.l.b16 %v161
    %v199 = vpack.c.b16 %v184, %v183
    %v200 = vpack.c.b16 %v186, %v185
    %v201 = vpack.c.b16 %v188, %v187
    %v202 = vpack.c.b16 %v190, %v189
    %v203 = vpack.c.b16 %v192, %v191
    %v204 = vpack.c.b16 %v194, %v193
    %v205 = vpack.c.b16 %v196, %v195
    %v206 = vpack.c.b16 %v198, %v197
    %215 = vmatprep.subr.bf16.mxu0 0
    %216 = vmatpush1.bf16.msra.mxu0 %v199
    %217 = vmatprep.subr.bf16.mxu0 0
    %218 = vmatpush1.bf16.msra.mxu0 %v200
    %219 = vmatprep.subr.bf16.mxu0 0
    %220 = vmatpush1.bf16.msra.mxu0 %v201
    %221 = vmatprep.subr.bf16.mxu0 0
    %222 = vmatpush1.bf16.msra.mxu0 %v202
    %223 = vmatprep.subr.bf16.mxu0 0
    %224 = vmatpush1.bf16.msra.mxu0 %v203
    %225 = vmatprep.subr.bf16.mxu0 0
    %226 = vmatpush1.bf16.msra.mxu0 %v204
    %227 = vmatprep.subr.bf16.mxu0 0
    %228 = vmatpush1.bf16.msra.mxu0 %v205
    %229 = vmatprep.subr.bf16.mxu0 0
    %230 = vmatpush1.bf16.msra.mxu0 %v206
    %231 = vmatprep.subr.bf16.mxu0 0
    %232 = vmatpush1.bf16.msra.mxu0 0
    %233 = vmatprep.subr.bf16.mxu0 0
    %234 = vmatpush1.bf16.msra.mxu0 0
    %235 = vmatprep.subr.bf16.mxu0 0
    %236 = vmatpush1.bf16.msra.mxu0 0
    %237 = vmatprep.subr.bf16.mxu0 0
    %238 = vmatpush1.bf16.msra.mxu0 0
    %239 = vmatprep.subr.bf16.mxu0 0
    %240 = vmatpush1.bf16.msra.mxu0 0
    %241 = vmatprep.subr.bf16.mxu0 0
    %242 = vmatpush1.bf16.msra.mxu0 0
    %243 = vmatprep.subr.bf16.mxu0 0
    %244 = vmatpush1.bf16.msra.mxu0 0
    %245 = vmatprep.subr.bf16.mxu0 0
    %246 = vmatpush1.bf16.msra.mxu0 0
    %247 = vmatprep.mubr.bf16.mxu0 0
    %248 = vmatmul.mubr.bf16.gmra.mrb[0].mxu0 %v145
    %v249 = vpop.f32.mrb[0].mxu0
    %v250 = vadd.f32 %v166, %v249
    %v251 = vpop.f32.mrb[0].mxu0
    %v252 = vpop.f32.mrb[0].mxu0
    %v253 = vpop.f32.mrb[0].mxu0
    %254 = vdwg.mxu0
    %v255 = vmin.f32 %v250, 20.0
    %v256 = vmul.f32 %v255, 1.442695
    %v257 = vpow.pop %v256
    %v258 = vadd.f32 %v257, 2.0
    %v259 = vmul.f32 %v257, %v258
    %v260 = vadd.f32 %v259, 2.0
    %v261 = vrcp.pop %v260
    %v262 = vmul.f32 %v259, %v261
    %vm263 = vcmp.gt.f32.partialorder %v250, 20.0
    %v264 = vmul.f32 %v250, %v262
    %v265 = vsel %vm263, %v250, %v264
    %v266 = vpack.c.bf16 %v265, %v265
    %v267 = vld [vmem:[#allocation5] sm:$0xf]
    %v268 = vld [vmem:[#allocation5 + $0x4] sm:$0xf]
    %v269 = vld [vmem:[#allocation5 + $0x8] sm:$0xf]
    %v270 = vld [vmem:[#allocation5 + $0xc] sm:$0xf]
    %v271 = vld [vmem:[#allocation5 + $0x10] sm:$0xf]
    %v272 = vld [vmem:[#allocation5 + $0x14] sm:$0xf]
    %v273 = vld [vmem:[#allocation5 + $0x18] sm:$0xf]
    %v274 = vld [vmem:[#allocation5 + $0x1c] sm:$0xf]
    %v275 = vld [vmem:[#allocation5 + $0x20] sm:$0xf]
    %v276 = vld [vmem:[#allocation5 + $0x24] sm:$0xf]
    %v277 = vld [vmem:[#allocation5 + $0x28] sm:$0xf]
    %v278 = vld [vmem:[#allocation5 + $0x2c] sm:$0xf]
    %v279 = vld [vmem:[#allocation5 + $0x30] sm:$0xf]
    %v280 = vld [vmem:[#allocation5 + $0x34] sm:$0xf]
    %v281 = vld [vmem:[#allocation5 + $0x38] sm:$0xf]
    %v282 = vld [vmem:[#allocation5 + $0x3c] sm:$0xf]
    %v283 = vld [vmem:[%s5 + $0x2] sm:$0x1]
    %v284 = vlaneseq
    %v285 = vshrl.u32 %v284, 7
    %v286 = vsub.s32 0, %v285
    %v287 = vrot.slane %v283, %v286
    %v304 = vunpack.c.l.b16 %v267
    %v305 = vunpack.c.l.b16 %v268
    %v306 = vunpack.c.l.b16 %v269
    %v307 = vunpack.c.l.b16 %v270
    %v308 = vunpack.c.l.b16 %v271
    %v309 = vunpack.c.l.b16 %v272
    %v310 = vunpack.c.l.b16 %v273
    %v311 = vunpack.c.l.b16 %v274
    %v312 = vunpack.c.l.b16 %v275
    %v313 = vunpack.c.l.b16 %v276
    %v314 = vunpack.c.l.b16 %v277
    %v315 = vunpack.c.l.b16 %v278
    %v316 = vunpack.c.l.b16 %v279
    %v317 = vunpack.c.l.b16 %v280
    %v318 = vunpack.c.l.b16 %v281
    %v319 = vunpack.c.l.b16 %v282
    %v320 = vpack.c.b16 %v305, %v304
    %v321 = vpack.c.b16 %v307, %v306
    %v322 = vpack.c.b16 %v309, %v308
    %v323 = vpack.c.b16 %v311, %v310
    %v324 = vpack.c.b16 %v313, %v312
    %v325 = vpack.c.b16 %v315, %v314
    %v326 = vpack.c.b16 %v317, %v316
    %v327 = vpack.c.b16 %v319, %v318
    %336 = vmatprep.subr.bf16.mxu0 0
    %337 = vmatpush1.bf16.msra.mxu0 %v320
    %338 = vmatprep.subr.bf16.mxu0 0
    %339 = vmatpush1.bf16.msra.mxu0 %v321
    %340 = vmatprep.subr.bf16.mxu0 0
    %341 = vmatpush1.bf16.msra.mxu0 %v322
    %342 = vmatprep.subr.bf16.mxu0 0
    %343 = vmatpush1.bf16.msra.mxu0 %v323
    %344 = vmatprep.subr.bf16.mxu0 0
    %345 = vmatpush1.bf16.msra.mxu0 %v324
    %346 = vmatprep.subr.bf16.mxu0 0
    %347 = vmatpush1.bf16.msra.mxu0 %v325
    %348 = vmatprep.subr.bf16.mxu0 0
    %349 = vmatpush1.bf16.msra.mxu0 %v326
    %350 = vmatprep.subr.bf16.mxu0 0
    %351 = vmatpush1.bf16.msra.mxu0 %v327
    %352 = vmatprep.subr.bf16.mxu0 0
    %353 = vmatpush1.bf16.msra.mxu0 0
    %354 = vmatprep.subr.bf16.mxu0 0
    %355 = vmatpush1.bf16.msra.mxu0 0
    %356 = vmatprep.subr.bf16.mxu0 0
    %357 = vmatpush1.bf16.msra.mxu0 0
    %358 = vmatprep.subr.bf16.mxu0 0
    %359 = vmatpush1.bf16.msra.mxu0 0
    %360 = vmatprep.subr.bf16.mxu0 0
    %361 = vmatpush1.bf16.msra.mxu0 0
    %362 = vmatprep.subr.bf16.mxu0 0
    %363 = vmatpush1.bf16.msra.mxu0 0
    %364 = vmatprep.subr.bf16.mxu0 0
    %365 = vmatpush1.bf16.msra.mxu0 0
    %366 = vmatprep.subr.bf16.mxu0 0
    %367 = vmatpush1.bf16.msra.mxu0 0
    %368 = vmatprep.mubr.bf16.mxu0 0
    %369 = vmatmul.mubr.bf16.gmra.mrb[0].mxu0 %v266
    %v370 = vpop.f32.mrb[0].mxu0
    %v371 = vadd.f32 %v287, %v370
    %v372 = vpop.f32.mrb[0].mxu0
    %v373 = vpop.f32.mrb[0].mxu0
    %v374 = vpop.f32.mrb[0].mxu0
    %375 = vdwg.mxu0
    %v376 = vmin.f32 %v371, 20.0
    %v377 = vmul.f32 %v376, 1.442695
    %v378 = vpow.pop %v377
    %v379 = vadd.f32 %v378, 2.0
    %v380 = vmul.f32 %v378, %v379
    %v381 = vadd.f32 %v380, 2.0
    %v382 = vrcp.pop %v381
    %v383 = vmul.f32 %v380, %v382
    %vm384 = vcmp.gt.f32.partialorder %v371, 20.0
    %v385 = vmul.f32 %v371, %v383
    %v386 = vsel %vm384, %v371, %v385
    %v387 = vpack.c.bf16 %v386, %v386
    %v388 = vld [vmem:[%s4] sm:$0xf]
    %v389 = vld [vmem:[%s4 + $0x4] sm:$0xf]
    %v390 = vld [vmem:[%s4 + $0x8] sm:$0xf]
    %v391 = vld [vmem:[%s4 + $0xc] sm:$0xf]
    %v392 = vld [vmem:[%s4 + $0x10] sm:$0xf]
    %v393 = vld [vmem:[%s4 + $0x14] sm:$0xf]
    %v394 = vld [vmem:[%s4 + $0x18] sm:$0xf]
    %v395 = vld [vmem:[%s4 + $0x1c] sm:$0xf]
    %v396 = vld [vmem:[%s4 + $0x20] sm:$0xf]
    %v397 = vld [vmem:[%s4 + $0x24] sm:$0xf]
    %v398 = vld [vmem:[%s4 + $0x28] sm:$0xf]
    %v399 = vld [vmem:[%s4 + $0x2c] sm:$0xf]
    %v400 = vld [vmem:[%s4 + $0x30] sm:$0xf]
    %v401 = vld [vmem:[%s4 + $0x34] sm:$0xf]
    %v402 = vld [vmem:[%s4 + $0x38] sm:$0xf]
    %v403 = vld [vmem:[%s4 + $0x3c] sm:$0xf]
    %v404 = vld [vmem:[%s5 + $0x3] sm:$0x1]
    %v405 = vlaneseq
    %v406 = vshrl.u32 %v405, 7
    %v407 = vsub.s32 0, %v406
    %v408 = vrot.slane %v404, %v407
    %v425 = vunpack.c.l.b16 %v388
    %v426 = vunpack.c.l.b16 %v389
    %v427 = vunpack.c.l.b16 %v390
    %v428 = vunpack.c.l.b16 %v391
    %v429 = vunpack.c.l.b16 %v392
    %v430 = vunpack.c.l.b16 %v393
    %v431 = vunpack.c.l.b16 %v394
    %v432 = vunpack.c.l.b16 %v395
    %v433 = vunpack.c.l.b16 %v396
    %v434 = vunpack.c.l.b16 %v397
    %v435 = vunpack.c.l.b16 %v398
    %v436 = vunpack.c.l.b16 %v399
    %v437 = vunpack.c.l.b16 %v400
    %v438 = vunpack.c.l.b16 %v401
    %v439 = vunpack.c.l.b16 %v402
    %v440 = vunpack.c.l.b16 %v403
    %v441 = vpack.c.b16 %v426, %v425
    %v442 = vpack.c.b16 %v428, %v427
    %v443 = vpack.c.b16 %v430, %v429
    %v444 = vpack.c.b16 %v432, %v431
    %v445 = vpack.c.b16 %v434, %v433
    %v446 = vpack.c.b16 %v436, %v435
    %v447 = vpack.c.b16 %v438, %v437
    %v448 = vpack.c.b16 %v440, %v439
    %457 = vmatprep.subr.bf16.mxu0 0
    %458 = vmatpush1.bf16.msra.mxu0 %v441
    %459 = vmatprep.subr.bf16.mxu0 0
    %460 = vmatpush1.bf16.msra.mxu0 %v442
    %461 = vmatprep.subr.bf16.mxu0 0
    %462 = vmatpush1.bf16.msra.mxu0 %v443
    %463 = vmatprep.subr.bf16.mxu0 0
    %464 = vmatpush1.bf16.msra.mxu0 %v444
    %465 = vmatprep.subr.bf16.mxu0 0
    %466 = vmatpush1.bf16.msra.mxu0 %v445
    %467 = vmatprep.subr.bf16.mxu0 0
    %468 = vmatpush1.bf16.msra.mxu0 %v446
    %469 = vmatprep.subr.bf16.mxu0 0
    %470 = vmatpush1.bf16.msra.mxu0 %v447
    %471 = vmatprep.subr.bf16.mxu0 0
    %472 = vmatpush1.bf16.msra.mxu0 %v448
    %473 = vmatprep.subr.bf16.mxu0 0
    %474 = vmatpush1.bf16.msra.mxu0 0
    %475 = vmatprep.subr.bf16.mxu0 0
    %476 = vmatpush1.bf16.msra.mxu0 0
    %477 = vmatprep.subr.bf16.mxu0 0
    %478 = vmatpush1.bf16.msra.mxu0 0
    %479 = vmatprep.subr.bf16.mxu0 0
    %480 = vmatpush1.bf16.msra.mxu0 0
    %481 = vmatprep.subr.bf16.mxu0 0
    %482 = vmatpush1.bf16.msra.mxu0 0
    %483 = vmatprep.subr.bf16.mxu0 0
    %484 = vmatpush1.bf16.msra.mxu0 0
    %485 = vmatprep.subr.bf16.mxu0 0
    %486 = vmatpush1.bf16.msra.mxu0 0
    %487 = vmatprep.subr.bf16.mxu0 0
    %488 = vmatpush1.bf16.msra.mxu0 0
    %489 = vmatprep.mubr.bf16.mxu0 0
    %490 = vmatmul.mubr.bf16.gmra.mrb[0].mxu0 %v387
    %v491 = vpop.f32.mrb[0].mxu0
    %v492 = vadd.f32 %v408, %v491
    %v493 = vpop.f32.mrb[0].mxu0
    %v494 = vpop.f32.mrb[0].mxu0
    %v495 = vpop.f32.mrb[0].mxu0
    %496 = vdwg.mxu0
    %v497 = vlaneseq
    %v498 = vand.u32 %v497, 127
    %vm499 = vcmp.lt.s32.totalorder %v498, 0
    %v500 = vsub.s32 0, %v498
    %v501 = vsel %vm499, %v500, %v498
    %v502 = vshrl.u32 %v501, 4
    %v503 = vand.u32 %v501, 15
    %v504 = vsub.s32 0, %v503
    %v505 = vsel %vm499, %v504, %v503
    %vm506 = vcmp.ne.s32.totalorder %v505, 0
    %vm507 = vcmp.lt.s32.totalorder %v505, 0
    %vm508 = vmand %vm507, %vm506
    %v509 = vadd.s32 %v505, 16
    %v510 = vsel %vm508, %v509, %v505
    %vm511 = vcmp.lt.s32.totalorder %v510, 8
    %v512 = vtanh.pop %v492
    %v513 = vmax.f32 %v492, 0.0
    %v514 = vsel %vm511, %v512, %v513
    %515 = vst.msk [vmem:[#allocation7] sm:$0xff] %vm90, %v514
    // Predicated region
    $region34: #{tpu_custom_call.1} parent=1 // pred_check
      _
    $region35: #{tpu_custom_call.1} parent=1 // pred_check_branch
      %517 = sbr.rel (0) target = $region37
    $region36: #{tpu_custom_call.1} parent=1 // pred_region
      %s519 = ssub.s32 128, 128
      %520 = vsyncadd [#allocation4], %s519
      %s522 = sshll.u32 [#allocation7], 4
      %s523 = int_to_ptr.vmem [resolvable:$true] %s522
      %525 = dma.vmem_to_hbm [thread:$0]  %s523, 128, %s6, [#allocation4]
    $region37: #{tpu_custom_call.1} parent=1 // pred_fallthru
      _
    // Predicated region
    $region38: #{tpu_custom_call.1} parent=1 // pred_check
      _
    $region39: #{tpu_custom_call.1} parent=1 // pred_check_branch
      %527 = sbr.rel (0) target = $region41
    $region40: #{tpu_custom_call.1} parent=1 // pred_region
      %528 = dma.done [#allocation4], 128
    $region41: #{tpu_custom_call.1} parent=1 // pred_fallthru
      _
    %529 = vsyncpa [#allocation3], 1
    %530 = vsyncpa [#allocation6], 1
    %531 = vsyncpa [#allocation4], 1

</llo_original>
